<compile_context>
chip_gen: v7x
topology: tpu7x:2x2x1
jax: 0.10.0
libtpu: 0.0.40
codegen_flags: <defaults>
</compile_context>

<pallas_src>
import functools
import math

import jax
import jax.numpy as jnp
from jax.experimental import pallas as pl
from jax.experimental.pallas import tpu as pltpu


def _round_up(x, m):
    return ((x + m - 1) // m) * m


def _sigmoid(x):
    # 1 EUP op (tanh) + cheap VPU mul/add instead of exp + reciprocal.
    return 0.5 * jnp.tanh(0.5 * x) + 0.5


# -----------------------------------------------------------------------------
# Kernel
# -----------------------------------------------------------------------------
def lstm_model_kernel(x_ref, w0_ref, b0_ref, wr_ref, br_ref,
                      bn_scale_ref, bn_shift_ref,
                      fc1_w_ref, fc1_b_ref, fc2_w_ref, fc2_b_ref,
                      out_ref, *, hidden_dim, num_layers):
    H = hidden_dim
    H2 = 2 * H

    def fused_cell(inp, w, b):
        # w: (in, 6H), columns [i_f|i_b|g_f|g_b|o_f|o_b]; b: (1, 6H).
        # Single MXU dot covers both directions; f32 accumulation.
        gates = jnp.dot(inp.astype(w.dtype), w,
                        preferred_element_type=jnp.float32) + b
        i = _sigmoid(gates[:, 0:H2])
        g = jnp.tanh(gates[:, H2:2 * H2])
        o = _sigmoid(gates[:, 2 * H2:3 * H2])
        # c_1 = i*g (f * c_0 == 0); result is already laid out [h_fwd | h_bwd].
        return o * jnp.tanh(i * g)                              # (TB, 2H)

    h = fused_cell(x_ref[...], w0_ref[...], b0_ref[...])
    for l in range(num_layers - 1):        # inter-layer dropout: eval identity
        h = fused_cell(h, wr_ref[l], br_ref[l])

    # lstm_out[:, -1, :] == h because seq_len == 1.

    # BatchNorm1d (eval mode): precomputed affine.
    h = h * bn_scale_ref[...] + bn_shift_ref[...]

    # fc1 + ReLU (dropout after ReLU: eval identity).
    h = jnp.dot(h.astype(fc1_w_ref.dtype), fc1_w_ref[...],
                preferred_element_type=jnp.float32) + fc1_b_ref[...]
    h = jnp.maximum(h, 0.0)

    # fc2 (output columns zero-padded to a 128-lane multiple).
    out_ref[...] = (jnp.dot(h.astype(fc2_w_ref.dtype), fc2_w_ref[...],
                            preferred_element_type=jnp.float32)
                    + fc2_b_ref[...])


# -----------------------------------------------------------------------------
# Wrapper
# -----------------------------------------------------------------------------
def lstm_model_forward(x, p, *, hidden_dim, num_layers, out_dim,
                       block_batch=128):
    B, D_in = x.shape
    out_pad = p["fc2_w"].shape[1]

    # Batch tiling: pad batch to a sublane multiple and grid over it.
    TB = min(block_batch, _round_up(B, 8))
    Bp = _round_up(B, TB)
    if Bp != B:
        x = jnp.pad(x, ((0, Bp - B), (0, 0)))

    kernel = functools.partial(lstm_model_kernel,
                               hidden_dim=hidden_dim, num_layers=num_layers)

    def full_spec(a):
        nd = a.ndim
        return pl.BlockSpec(a.shape, lambda i, _nd=nd: (0,) * _nd)

    args = (x, p["w0"], p["b0"], p["wr"], p["br"],
            p["bn_scale"], p["bn_shift"],
            p["fc1_w"], p["fc1_b"], p["fc2_w"], p["fc2_b"])
    in_specs = ([pl.BlockSpec((TB, D_in), lambda i: (i, 0))]
                + [full_spec(a) for a in args[1:]])

    out = pl.pallas_call(
        kernel,
        out_shape=jax.ShapeDtypeStruct((Bp, out_pad), jnp.float32),
        grid=(Bp // TB,),
        in_specs=in_specs,
        out_specs=pl.BlockSpec((TB, out_pad), lambda i: (i, 0)),
        compiler_params=pltpu.CompilerParams(
            dimension_semantics=("parallel",)),
    )(*args)
    return out[:B, :out_dim]


# -----------------------------------------------------------------------------
# Parameters: PyTorch-convention init + wrapper-side packing into kernel layout
# -----------------------------------------------------------------------------
def init_torch_style_params(key, input_dim, hidden_dim, output_dim, num_layers):
    """Deterministic synthetic parameters in nn.LSTM / nn.Linear / BN shapes."""
    H = hidden_dim
    k_lstm = 1.0 / math.sqrt(H)

    def u(kk, shape, bound):
        return jax.random.uniform(kk, shape, jnp.float32, -bound, bound)

    keys = iter(jax.random.split(key, 8 * num_layers + 8))
    p = {}
    for layer in range(num_layers):
        in_dim = input_dim if layer == 0 else 2 * H
        for suff in ("", "_reverse"):
            name = f"l{layer}{suff}"
            # rows are gate-ordered [i; f; g; o], each H rows (PyTorch layout)
            p[f"weight_ih_{name}"] = u(next(keys), (4 * H, in_dim), k_lstm)
            # weight_hh_* omitted: with h_0 = 0 and seq_len = 1 its
            # contribution is exactly zero for every layer/direction.
            p[f"bias_ih_{name}"] = u(next(keys), (4 * H,), k_lstm)
            p[f"bias_hh_{name}"] = u(next(keys), (4 * H,), k_lstm)

    # BatchNorm1d(2H) default init, eval mode running stats.
    p["bn_gamma"] = jnp.ones((2 * H,), jnp.float32)
    p["bn_beta"] = jnp.zeros((2 * H,), jnp.float32)
    p["bn_mean"] = jnp.zeros((2 * H,), jnp.float32)
    p["bn_var"] = jnp.ones((2 * H,), jnp.float32)

    k1 = 1.0 / math.sqrt(2 * H)
    p["fc1_weight"] = u(next(keys), (H, 2 * H), k1)
    p["fc1_bias"] = u(next(keys), (H,), k1)
    k2 = 1.0 / math.sqrt(H)
    p["fc2_weight"] = u(next(keys), (output_dim, H), k2)
    p["fc2_bias"] = u(next(keys), (output_dim,), k2)
    return p


def pack_params(p, *, hidden_dim, num_layers, output_dim,
                matmul_dtype=jnp.float32):
    """Wrapper-side layout work: drop the dead forget gate, fuse fwd/bwd
    weights into one (in, 6H) matrix packed by gate [i_f|i_b|g_f|g_b|o_f|o_b],
    pre-transpose to (in, out), fold biases and BN stats, pad fc2 output to a
    128-lane multiple.  `matmul_dtype=jnp.bfloat16` halves weight DMA on
    v6e/v7x (dots still accumulate in f32)."""
    H = hidden_dim

    def pack_layer(layer):
        ws, bs = [], []
        for suff in ("", "_reverse"):
            name = f"l{layer}{suff}"
            w = p[f"weight_ih_{name}"]                        # (4H, in) [i|f|g|o]
            b = p[f"bias_ih_{name}"] + p[f"bias_hh_{name}"]   # (4H,)
            keep_w = jnp.concatenate([w[0:H], w[2 * H:3 * H], w[3 * H:4 * H]],
                                     axis=0)                   # drop f gate
            ws.append(keep_w.T)                                # (in, 3H) [i|g|o]
            bs.append(jnp.concatenate([b[0:H], b[2 * H:3 * H], b[3 * H:4 * H]]))
        wf, wb = ws
        bf, bb = bs
        w_fused = jnp.concatenate(
            [wf[:, 0:H], wb[:, 0:H], wf[:, H:2 * H], wb[:, H:2 * H],
             wf[:, 2 * H:3 * H], wb[:, 2 * H:3 * H]], axis=1)  # (in, 6H)
        b_fused = jnp.concatenate(
            [bf[0:H], bb[0:H], bf[H:2 * H], bb[H:2 * H],
             bf[2 * H:3 * H], bb[2 * H:3 * H]])[None, :]       # (1, 6H)
        return w_fused, b_fused

    w0, b0 = pack_layer(0)
    if num_layers > 1:
        wr_l, br_l = zip(*[pack_layer(l) for l in range(1, num_layers)])
        wr = jnp.stack(wr_l)                                   # (L-1, 2H, 6H)
        br = jnp.stack(br_l)                                   # (L-1, 1, 6H)
    else:
        wr = jnp.zeros((1, 2 * H, 6 * H), jnp.float32)         # unused dummy
        br = jnp.zeros((1, 1, 6 * H), jnp.float32)

    eps = 1e-5
    bn_scale = (p["bn_gamma"] / jnp.sqrt(p["bn_var"] + eps))[None, :]
    bn_shift = (p["bn_beta"] - p["bn_mean"] * bn_scale[0])[None, :]

    fc1_w = p["fc1_weight"].T                                  # (2H, H)
    fc1_b = p["fc1_bias"][None, :]
    out_pad = _round_up(output_dim, 128)
    fc2_w = jnp.zeros((H, out_pad), jnp.float32).at[:, :output_dim].set(
        p["fc2_weight"].T)
    fc2_b = jnp.zeros((1, out_pad), jnp.float32).at[:, :output_dim].set(
        p["fc2_bias"])

    md = matmul_dtype
    return dict(w0=w0.astype(md), b0=b0, wr=wr.astype(md), br=br,
                bn_scale=bn_scale, bn_shift=bn_shift,
                fc1_w=fc1_w.astype(md), fc1_b=fc1_b,
                fc2_w=fc2_w.astype(md), fc2_b=fc2_b)


if __name__ == "__main__":
    batch, input_dim, hidden_dim, output_dim, num_layers = 8, 16, 32, 8, 4

    key = jax.random.PRNGKey(0)
    pkey, xkey = jax.random.split(key)
    torch_params = init_torch_style_params(pkey, input_dim, hidden_dim,
                                           output_dim, num_layers)
    # matmul_dtype=jnp.bfloat16 recommended on v6e/v7x; f32 kept here so the
    # script is exactly faithful on all generations (incl. v5e elementwise).
    params = pack_params(torch_params, hidden_dim=hidden_dim,
                         num_layers=num_layers, output_dim=output_dim,
                         matmul_dtype=jnp.float32)

    x = jax.random.normal(xkey, (batch, input_dim), jnp.float32)
    out = lstm_model_forward(x, params, hidden_dim=hidden_dim,
                             num_layers=num_layers, out_dim=output_dim)
    out = jax.block_until_ready(out)
    assert out.shape == (batch, output_dim) and out.dtype == jnp.float32
    print("KERNEL_OK")
</pallas_src>

<mosaic_0001>
module attributes {stable_mosaic.version = 11 : i64} {
  func.func @lstm_model_kernel(%arg0: i32, %arg1: memref<8x16xf32, #tpu.memory_space<vmem>>, %arg2: memref<16x192xf32, #tpu.memory_space<vmem>>, %arg3: memref<1x192xf32, #tpu.memory_space<vmem>>, %arg4: memref<3x64x192xf32, #tpu.memory_space<vmem>>, %arg5: memref<3x1x192xf32, #tpu.memory_space<vmem>>, %arg6: memref<1x64xf32, #tpu.memory_space<vmem>>, %arg7: memref<1x64xf32, #tpu.memory_space<vmem>>, %arg8: memref<64x32xf32, #tpu.memory_space<vmem>>, %arg9: memref<1x32xf32, #tpu.memory_space<vmem>>, %arg10: memref<32x128xf32, #tpu.memory_space<vmem>>, %arg11: memref<1x128xf32, #tpu.memory_space<vmem>>, %arg12: memref<8x128xf32, #tpu.memory_space<vmem>>) attributes {dimension_semantics = [#tpu.dimension_semantics<parallel>], iteration_bounds = array<i64: 1>, scalar_prefetch = 0 : i64, scratch_operands = 0 : i64, tpu.core_type = #tpu.core_type<tc>, window_params = [{transform_indices = @transform_0, window_bounds = array<i64: 8, 16>}, {pipeline_mode = #tpu.pipeline_mode<synchronous>, transform_indices = @transform_1, window_bounds = array<i64: 16, 192>}, {pipeline_mode = #tpu.pipeline_mode<synchronous>, transform_indices = @transform_2, window_bounds = array<i64: 1, 192>}, {pipeline_mode = #tpu.pipeline_mode<synchronous>, transform_indices = @transform_3, window_bounds = array<i64: 3, 64, 192>}, {pipeline_mode = #tpu.pipeline_mode<synchronous>, transform_indices = @transform_4, window_bounds = array<i64: 3, 1, 192>}, {pipeline_mode = #tpu.pipeline_mode<synchronous>, transform_indices = @transform_5, window_bounds = array<i64: 1, 64>}, {pipeline_mode = #tpu.pipeline_mode<synchronous>, transform_indices = @transform_6, window_bounds = array<i64: 1, 64>}, {pipeline_mode = #tpu.pipeline_mode<synchronous>, transform_indices = @transform_7, window_bounds = array<i64: 64, 32>}, {pipeline_mode = #tpu.pipeline_mode<synchronous>, transform_indices = @transform_8, window_bounds = array<i64: 1, 32>}, {pipeline_mode = #tpu.pipeline_mode<synchronous>, transform_indices = @transform_9, window_bounds = array<i64: 32, 128>}, {pipeline_mode = #tpu.pipeline_mode<synchronous>, transform_indices = @transform_10, window_bounds = array<i64: 1, 128>}, {transform_indices = @transform_11, window_bounds = array<i64: 8, 128>}]} {
    %c0 = arith.constant 0 : index
    %c0_0 = arith.constant 0 : index
    %0 = vector.load %arg1[%c0, %c0_0] : memref<8x16xf32, #tpu.memory_space<vmem>>, vector<8x16xf32>
    %c0_1 = arith.constant 0 : index
    %c0_2 = arith.constant 0 : index
    %1 = vector.load %arg2[%c0_1, %c0_2] : memref<16x192xf32, #tpu.memory_space<vmem>>, vector<16x192xf32>
    %c0_3 = arith.constant 0 : index
    %c0_4 = arith.constant 0 : index
    %2 = vector.load %arg3[%c0_3, %c0_4] : memref<1x192xf32, #tpu.memory_space<vmem>>, vector<1x192xf32>
    %cst = arith.constant dense<0.000000e+00> : vector<8x192xf32>
    %3 = tpu.matmul %0, %1, %cst {dimension_numbers = #tpu.dot_dimension_numbers<[1], [0], [0], [1], [0, 0, 1, 1], [], []>} : vector<8x16xf32>, vector<16x192xf32>, vector<8x192xf32> -> vector<8x192xf32>
    %4 = vector.broadcast %2 : vector<1x192xf32> to vector<8x192xf32>
    %5 = arith.addf %3, %4 : vector<8x192xf32>
    %6 = vector.extract_strided_slice %5 {offsets = [0, 0], sizes = [8, 64], strides = [1, 1]} : vector<8x192xf32> to vector<8x64xf32>
    %cst_5 = arith.constant 5.000000e-01 : f32
    %7 = vector.broadcast %cst_5 : f32 to vector<8x64xf32>
    %8 = arith.mulf %7, %6 : vector<8x64xf32>
    %9 = math.tanh %8 : vector<8x64xf32>
    %cst_6 = arith.constant 5.000000e-01 : f32
    %10 = vector.broadcast %cst_6 : f32 to vector<8x64xf32>
    %11 = arith.mulf %10, %9 : vector<8x64xf32>
    %cst_7 = arith.constant 5.000000e-01 : f32
    %12 = vector.broadcast %cst_7 : f32 to vector<8x64xf32>
    %13 = arith.addf %11, %12 : vector<8x64xf32>
    %14 = vector.extract_strided_slice %5 {offsets = [0, 64], sizes = [8, 64], strides = [1, 1]} : vector<8x192xf32> to vector<8x64xf32>
    %15 = math.tanh %14 : vector<8x64xf32>
    %16 = vector.extract_strided_slice %5 {offsets = [0, 128], sizes = [8, 64], strides = [1, 1]} : vector<8x192xf32> to vector<8x64xf32>
    %cst_8 = arith.constant 5.000000e-01 : f32
    %17 = vector.broadcast %cst_8 : f32 to vector<8x64xf32>
    %18 = arith.mulf %17, %16 : vector<8x64xf32>
    %19 = math.tanh %18 : vector<8x64xf32>
    %cst_9 = arith.constant 5.000000e-01 : f32
    %20 = vector.broadcast %cst_9 : f32 to vector<8x64xf32>
    %21 = arith.mulf %20, %19 : vector<8x64xf32>
    %cst_10 = arith.constant 5.000000e-01 : f32
    %22 = vector.broadcast %cst_10 : f32 to vector<8x64xf32>
    %23 = arith.addf %21, %22 : vector<8x64xf32>
    %24 = arith.mulf %13, %15 : vector<8x64xf32>
    %25 = math.tanh %24 : vector<8x64xf32>
    %26 = arith.mulf %23, %25 : vector<8x64xf32>
    %c0_11 = arith.constant 0 : index
    %c0_12 = arith.constant 0 : index
    %c0_13 = arith.constant 0 : index
    %27 = vector.load %arg4[%c0_11, %c0_12, %c0_13] : memref<3x64x192xf32, #tpu.memory_space<vmem>>, vector<1x64x192xf32>
    %28 = vector.shape_cast %27 : vector<1x64x192xf32> to vector<64x192xf32>
    %c0_14 = arith.constant 0 : index
    %c0_15 = arith.constant 0 : index
    %c0_16 = arith.constant 0 : index
    %29 = vector.load %arg5[%c0_14, %c0_15, %c0_16] : memref<3x1x192xf32, #tpu.memory_space<vmem>>, vector<1x1x192xf32>
    %30 = vector.shape_cast %29 : vector<1x1x192xf32> to vector<1x192xf32>
    %cst_17 = arith.constant dense<0.000000e+00> : vector<8x192xf32>
    %31 = tpu.matmul %26, %28, %cst_17 {dimension_numbers = #tpu.dot_dimension_numbers<[1], [0], [0], [1], [0, 0, 1, 1], [], []>} : vector<8x64xf32>, vector<64x192xf32>, vector<8x192xf32> -> vector<8x192xf32>
    %32 = vector.broadcast %30 : vector<1x192xf32> to vector<8x192xf32>
    %33 = arith.addf %31, %32 : vector<8x192xf32>
    %34 = vector.extract_strided_slice %33 {offsets = [0, 0], sizes = [8, 64], strides = [1, 1]} : vector<8x192xf32> to vector<8x64xf32>
    %cst_18 = arith.constant 5.000000e-01 : f32
    %35 = vector.broadcast %cst_18 : f32 to vector<8x64xf32>
    %36 = arith.mulf %35, %34 : vector<8x64xf32>
    %37 = math.tanh %36 : vector<8x64xf32>
    %cst_19 = arith.constant 5.000000e-01 : f32
    %38 = vector.broadcast %cst_19 : f32 to vector<8x64xf32>
    %39 = arith.mulf %38, %37 : vector<8x64xf32>
    %cst_20 = arith.constant 5.000000e-01 : f32
    %40 = vector.broadcast %cst_20 : f32 to vector<8x64xf32>
    %41 = arith.addf %39, %40 : vector<8x64xf32>
    %42 = vector.extract_strided_slice %33 {offsets = [0, 64], sizes = [8, 64], strides = [1, 1]} : vector<8x192xf32> to vector<8x64xf32>
    %43 = math.tanh %42 : vector<8x64xf32>
    %44 = vector.extract_strided_slice %33 {offsets = [0, 128], sizes = [8, 64], strides = [1, 1]} : vector<8x192xf32> to vector<8x64xf32>
    %cst_21 = arith.constant 5.000000e-01 : f32
    %45 = vector.broadcast %cst_21 : f32 to vector<8x64xf32>
    %46 = arith.mulf %45, %44 : vector<8x64xf32>
    %47 = math.tanh %46 : vector<8x64xf32>
    %cst_22 = arith.constant 5.000000e-01 : f32
    %48 = vector.broadcast %cst_22 : f32 to vector<8x64xf32>
    %49 = arith.mulf %48, %47 : vector<8x64xf32>
    %cst_23 = arith.constant 5.000000e-01 : f32
    %50 = vector.broadcast %cst_23 : f32 to vector<8x64xf32>
    %51 = arith.addf %49, %50 : vector<8x64xf32>
    %52 = arith.mulf %41, %43 : vector<8x64xf32>
    %53 = math.tanh %52 : vector<8x64xf32>
    %54 = arith.mulf %51, %53 : vector<8x64xf32>
    %c1 = arith.constant 1 : index
    %c0_24 = arith.constant 0 : index
    %c0_25 = arith.constant 0 : index
    %55 = vector.load %arg4[%c1, %c0_24, %c0_25] : memref<3x64x192xf32, #tpu.memory_space<vmem>>, vector<1x64x192xf32>
    %56 = vector.shape_cast %55 : vector<1x64x192xf32> to vector<64x192xf32>
    %c1_26 = arith.constant 1 : index
    %c0_27 = arith.constant 0 : index
    %c0_28 = arith.constant 0 : index
    %57 = vector.load %arg5[%c1_26, %c0_27, %c0_28] : memref<3x1x192xf32, #tpu.memory_space<vmem>>, vector<1x1x192xf32>
    %58 = vector.shape_cast %57 : vector<1x1x192xf32> to vector<1x192xf32>
    %cst_29 = arith.constant dense<0.000000e+00> : vector<8x192xf32>
    %59 = tpu.matmul %54, %56, %cst_29 {dimension_numbers = #tpu.dot_dimension_numbers<[1], [0], [0], [1], [0, 0, 1, 1], [], []>} : vector<8x64xf32>, vector<64x192xf32>, vector<8x192xf32> -> vector<8x192xf32>
    %60 = vector.broadcast %58 : vector<1x192xf32> to vector<8x192xf32>
    %61 = arith.addf %59, %60 : vector<8x192xf32>
    %62 = vector.extract_strided_slice %61 {offsets = [0, 0], sizes = [8, 64], strides = [1, 1]} : vector<8x192xf32> to vector<8x64xf32>
    %cst_30 = arith.constant 5.000000e-01 : f32
    %63 = vector.broadcast %cst_30 : f32 to vector<8x64xf32>
    %64 = arith.mulf %63, %62 : vector<8x64xf32>
    %65 = math.tanh %64 : vector<8x64xf32>
    %cst_31 = arith.constant 5.000000e-01 : f32
    %66 = vector.broadcast %cst_31 : f32 to vector<8x64xf32>
    %67 = arith.mulf %66, %65 : vector<8x64xf32>
    %cst_32 = arith.constant 5.000000e-01 : f32
    %68 = vector.broadcast %cst_32 : f32 to vector<8x64xf32>
    %69 = arith.addf %67, %68 : vector<8x64xf32>
    %70 = vector.extract_strided_slice %61 {offsets = [0, 64], sizes = [8, 64], strides = [1, 1]} : vector<8x192xf32> to vector<8x64xf32>
    %71 = math.tanh %70 : vector<8x64xf32>
    %72 = vector.extract_strided_slice %61 {offsets = [0, 128], sizes = [8, 64], strides = [1, 1]} : vector<8x192xf32> to vector<8x64xf32>
    %cst_33 = arith.constant 5.000000e-01 : f32
    %73 = vector.broadcast %cst_33 : f32 to vector<8x64xf32>
    %74 = arith.mulf %73, %72 : vector<8x64xf32>
    %75 = math.tanh %74 : vector<8x64xf32>
    %cst_34 = arith.constant 5.000000e-01 : f32
    %76 = vector.broadcast %cst_34 : f32 to vector<8x64xf32>
    %77 = arith.mulf %76, %75 : vector<8x64xf32>
    %cst_35 = arith.constant 5.000000e-01 : f32
    %78 = vector.broadcast %cst_35 : f32 to vector<8x64xf32>
    %79 = arith.addf %77, %78 : vector<8x64xf32>
    %80 = arith.mulf %69, %71 : vector<8x64xf32>
    %81 = math.tanh %80 : vector<8x64xf32>
    %82 = arith.mulf %79, %81 : vector<8x64xf32>
    %c2 = arith.constant 2 : index
    %c0_36 = arith.constant 0 : index
    %c0_37 = arith.constant 0 : index
    %83 = vector.load %arg4[%c2, %c0_36, %c0_37] : memref<3x64x192xf32, #tpu.memory_space<vmem>>, vector<1x64x192xf32>
    %84 = vector.shape_cast %83 : vector<1x64x192xf32> to vector<64x192xf32>
    %c2_38 = arith.constant 2 : index
    %c0_39 = arith.constant 0 : index
    %c0_40 = arith.constant 0 : index
    %85 = vector.load %arg5[%c2_38, %c0_39, %c0_40] : memref<3x1x192xf32, #tpu.memory_space<vmem>>, vector<1x1x192xf32>
    %86 = vector.shape_cast %85 : vector<1x1x192xf32> to vector<1x192xf32>
    %cst_41 = arith.constant dense<0.000000e+00> : vector<8x192xf32>
    %87 = tpu.matmul %82, %84, %cst_41 {dimension_numbers = #tpu.dot_dimension_numbers<[1], [0], [0], [1], [0, 0, 1, 1], [], []>} : vector<8x64xf32>, vector<64x192xf32>, vector<8x192xf32> -> vector<8x192xf32>
    %88 = vector.broadcast %86 : vector<1x192xf32> to vector<8x192xf32>
    %89 = arith.addf %87, %88 : vector<8x192xf32>
    %90 = vector.extract_strided_slice %89 {offsets = [0, 0], sizes = [8, 64], strides = [1, 1]} : vector<8x192xf32> to vector<8x64xf32>
    %cst_42 = arith.constant 5.000000e-01 : f32
    %91 = vector.broadcast %cst_42 : f32 to vector<8x64xf32>
    %92 = arith.mulf %91, %90 : vector<8x64xf32>
    %93 = math.tanh %92 : vector<8x64xf32>
    %cst_43 = arith.constant 5.000000e-01 : f32
    %94 = vector.broadcast %cst_43 : f32 to vector<8x64xf32>
    %95 = arith.mulf %94, %93 : vector<8x64xf32>
    %cst_44 = arith.constant 5.000000e-01 : f32
    %96 = vector.broadcast %cst_44 : f32 to vector<8x64xf32>
    %97 = arith.addf %95, %96 : vector<8x64xf32>
    %98 = vector.extract_strided_slice %89 {offsets = [0, 64], sizes = [8, 64], strides = [1, 1]} : vector<8x192xf32> to vector<8x64xf32>
    %99 = math.tanh %98 : vector<8x64xf32>
    %100 = vector.extract_strided_slice %89 {offsets = [0, 128], sizes = [8, 64], strides = [1, 1]} : vector<8x192xf32> to vector<8x64xf32>
    %cst_45 = arith.constant 5.000000e-01 : f32
    %101 = vector.broadcast %cst_45 : f32 to vector<8x64xf32>
    %102 = arith.mulf %101, %100 : vector<8x64xf32>
    %103 = math.tanh %102 : vector<8x64xf32>
    %cst_46 = arith.constant 5.000000e-01 : f32
    %104 = vector.broadcast %cst_46 : f32 to vector<8x64xf32>
    %105 = arith.mulf %104, %103 : vector<8x64xf32>
    %cst_47 = arith.constant 5.000000e-01 : f32
    %106 = vector.broadcast %cst_47 : f32 to vector<8x64xf32>
    %107 = arith.addf %105, %106 : vector<8x64xf32>
    %108 = arith.mulf %97, %99 : vector<8x64xf32>
    %109 = math.tanh %108 : vector<8x64xf32>
    %110 = arith.mulf %107, %109 : vector<8x64xf32>
    %c0_48 = arith.constant 0 : index
    %c0_49 = arith.constant 0 : index
    %111 = vector.load %arg6[%c0_48, %c0_49] : memref<1x64xf32, #tpu.memory_space<vmem>>, vector<1x64xf32>
    %112 = vector.broadcast %111 : vector<1x64xf32> to vector<8x64xf32>
    %113 = arith.mulf %110, %112 : vector<8x64xf32>
    %c0_50 = arith.constant 0 : index
    %c0_51 = arith.constant 0 : index
    %114 = vector.load %arg7[%c0_50, %c0_51] : memref<1x64xf32, #tpu.memory_space<vmem>>, vector<1x64xf32>
    %115 = vector.broadcast %114 : vector<1x64xf32> to vector<8x64xf32>
    %116 = arith.addf %113, %115 : vector<8x64xf32>
    %c0_52 = arith.constant 0 : index
    %c0_53 = arith.constant 0 : index
    %117 = vector.load %arg8[%c0_52, %c0_53] : memref<64x32xf32, #tpu.memory_space<vmem>>, vector<64x32xf32>
    %cst_54 = arith.constant dense<0.000000e+00> : vector<8x32xf32>
    %118 = tpu.matmul %116, %117, %cst_54 {dimension_numbers = #tpu.dot_dimension_numbers<[1], [0], [0], [1], [0, 0, 1, 1], [], []>} : vector<8x64xf32>, vector<64x32xf32>, vector<8x32xf32> -> vector<8x32xf32>
    %c0_55 = arith.constant 0 : index
    %c0_56 = arith.constant 0 : index
    %119 = vector.load %arg9[%c0_55, %c0_56] : memref<1x32xf32, #tpu.memory_space<vmem>>, vector<1x32xf32>
    %120 = vector.broadcast %119 : vector<1x32xf32> to vector<8x32xf32>
    %121 = arith.addf %118, %120 : vector<8x32xf32>
    %cst_57 = arith.constant 0.000000e+00 : f32
    %122 = vector.broadcast %cst_57 : f32 to vector<8x32xf32>
    %123 = arith.maximumf %121, %122 : vector<8x32xf32>
    %c0_58 = arith.constant 0 : index
    %c0_59 = arith.constant 0 : index
    %124 = vector.load %arg10[%c0_58, %c0_59] : memref<32x128xf32, #tpu.memory_space<vmem>>, vector<32x128xf32>
    %cst_60 = arith.constant dense<0.000000e+00> : vector<8x128xf32>
    %125 = tpu.matmul %123, %124, %cst_60 {dimension_numbers = #tpu.dot_dimension_numbers<[1], [0], [0], [1], [0, 0, 1, 1], [], []>} : vector<8x32xf32>, vector<32x128xf32>, vector<8x128xf32> -> vector<8x128xf32>
    %c0_61 = arith.constant 0 : index
    %c0_62 = arith.constant 0 : index
    %126 = vector.load %arg11[%c0_61, %c0_62] : memref<1x128xf32, #tpu.memory_space<vmem>>, vector<1x128xf32>
    %127 = vector.broadcast %126 : vector<1x128xf32> to vector<8x128xf32>
    %128 = arith.addf %125, %127 : vector<8x128xf32>
    %c0_63 = arith.constant 0 : index
    %c0_64 = arith.constant 0 : index
    %129 = vector.load %arg12[%c0_63, %c0_64] : memref<8x128xf32, #tpu.memory_space<vmem>>, vector<8x128xf32>
    tpu.vector_store %arg12[%c0_63, %c0_64], %128 {strides = array<i32>} : memref<8x128xf32, #tpu.memory_space<vmem>>, vector<8x128xf32>,
    return
  }
  func.func @transform_0(%arg0: i32) -> (i32, i32) {
    %c0_i32 = arith.constant 0 : i32
    %c0_i32_0 = arith.constant 0 : i32
    return %arg0, %c0_i32 : i32, i32
  }
  func.func @transform_1(%arg0: i32) -> (i32, i32) {
    %c0_i32 = arith.constant 0 : i32
    %c0_i32_0 = arith.constant 0 : i32
    %c0_i32_1 = arith.constant 0 : i32
    return %c0_i32, %c0_i32_0 : i32, i32
  }
  func.func @transform_2(%arg0: i32) -> (i32, i32) {
    %c0_i32 = arith.constant 0 : i32
    %c0_i32_0 = arith.constant 0 : i32
    %c0_i32_1 = arith.constant 0 : i32
    return %c0_i32, %c0_i32_0 : i32, i32
  }
  func.func @transform_3(%arg0: i32) -> (i32, i32, i32) {
    %c0_i32 = arith.constant 0 : i32
    %c0_i32_0 = arith.constant 0 : i32
    %c0_i32_1 = arith.constant 0 : i32
    %c0_i32_2 = arith.constant 0 : i32
    return %c0_i32, %c0_i32_0, %c0_i32_1 : i32, i32, i32
  }
  func.func @transform_4(%arg0: i32) -> (i32, i32, i32) {
    %c0_i32 = arith.constant 0 : i32
    %c0_i32_0 = arith.constant 0 : i32
    %c0_i32_1 = arith.constant 0 : i32
    %c0_i32_2 = arith.constant 0 : i32
    return %c0_i32, %c0_i32_0, %c0_i32_1 : i32, i32, i32
  }
  func.func @transform_5(%arg0: i32) -> (i32, i32) {
    %c0_i32 = arith.constant 0 : i32
    %c0_i32_0 = arith.constant 0 : i32
    %c0_i32_1 = arith.constant 0 : i32
    return %c0_i32, %c0_i32_0 : i32, i32
  }
  func.func @transform_6(%arg0: i32) -> (i32, i32) {
    %c0_i32 = arith.constant 0 : i32
    %c0_i32_0 = arith.constant 0 : i32
    %c0_i32_1 = arith.constant 0 : i32
    return %c0_i32, %c0_i32_0 : i32, i32
  }
  func.func @transform_7(%arg0: i32) -> (i32, i32) {
    %c0_i32 = arith.constant 0 : i32
    %c0_i32_0 = arith.constant 0 : i32
    %c0_i32_1 = arith.constant 0 : i32
    return %c0_i32, %c0_i32_0 : i32, i32
  }
  func.func @transform_8(%arg0: i32) -> (i32, i32) {
    %c0_i32 = arith.constant 0 : i32
    %c0_i32_0 = arith.constant 0 : i32
    %c0_i32_1 = arith.constant 0 : i32
    return %c0_i32, %c0_i32_0 : i32, i32
  }
  func.func @transform_9(%arg0: i32) -> (i32, i32) {
    %c0_i32 = arith.constant 0 : i32
    %c0_i32_0 = arith.constant 0 : i32
    %c0_i32_1 = arith.constant 0 : i32
    return %c0_i32, %c0_i32_0 : i32, i32
  }
  func.func @transform_10(%arg0: i32) -> (i32, i32) {
    %c0_i32 = arith.constant 0 : i32
    %c0_i32_0 = arith.constant 0 : i32
    %c0_i32_1 = arith.constant 0 : i32
    return %c0_i32, %c0_i32_0 : i32, i32
  }
  func.func @transform_11(%arg0: i32) -> (i32, i32) {
    %c0_i32 = arith.constant 0 : i32
    %c0_i32_0 = arith.constant 0 : i32
    return %arg0, %c0_i32 : i32, i32
  }
}

</mosaic_0001>

<llo_original>
// kernel: tpu_custom_call.1
$region0: #{tpu_custom_call.1}
  #allocation0 [shape = 'u32[]', space=smem, size = 0x4, offset = 0x4, fixed_abs, tag = 'smem constant byte address 0x4 - core index']
  #allocation1 [shape = 'u32[144,128]{1,0:T(1,128)}', space=vmem, size = 0x12000, scoped, tag = 'internal scratch']
  %s0 = inlined_call_operand.vmem [shape: f32[8,16], index: 0, kind: input, shape index: {}]
  %s1 = inlined_call_operand.vmem [shape: f32[16,192], index: 1, kind: input, shape index: {}]
  %s2 = inlined_call_operand.vmem [shape: f32[1,192], index: 2, kind: input, shape index: {}]
  %s3 = inlined_call_operand.hbm [shape: f32[3,64,192], index: 3, kind: input, shape index: {}]
  %s4 = inlined_call_operand.vmem [shape: f32[3,1,192], index: 4, kind: input, shape index: {}]
  %s5 = inlined_call_operand.vmem [shape: f32[1,64], index: 5, kind: input, shape index: {}]
  %s6 = inlined_call_operand.vmem [shape: f32[1,64], index: 6, kind: input, shape index: {}]
  %s7 = inlined_call_operand.vmem [shape: f32[64,32], index: 7, kind: input, shape index: {}]
  %s8 = inlined_call_operand.vmem [shape: f32[1,32], index: 8, kind: input, shape index: {}]
  %s9 = inlined_call_operand.vmem [shape: f32[32,128], index: 9, kind: input, shape index: {}]
  %s10 = inlined_call_operand.vmem [shape: f32[1,128], index: 10, kind: input, shape index: {}]
  %s11 = inlined_call_operand.hbm [shape: f32[8,128], index: 11, kind: output, shape index: {}]
  %s12 = sld [smem:[#allocation0]]
  $region58: #{tpu_custom_call.1} parent=0
    _
  %s14 = ssub.s32 1, %s12
  %s15 = scalar_select 0, %s14, %s12
  $region1: #{tpu_custom_call.1} parent=0
    #allocation2 [shape = 'u8[196608]{0}', space=vmem, size = 0x30000, scoped, tag = 'input window, operand 3, single buffered']
    #allocation3 [shape = 's32[1]{0}', space=sflag, size = 0x4, scoped, tag = 'scoped memory for tpu_custom_call.1']
    #allocation4 [shape = 's32[1]{0}', space=sflag, size = 0x4, scoped, tag = 'scoped memory for tpu_custom_call.1']
    #allocation5 [shape = 'u8[4096]{0}', space=vmem, size = 0x1000, scoped, tag = 'output window, operand 0, single buffered']
    %16 = vsyncpa [#allocation3], 0
    %17 = vsyncpa [#allocation4], 0
    // Predicated region
    $region2: #{tpu_custom_call.1} parent=1 // pred_check
      _
    $region3: #{tpu_custom_call.1} parent=1 // pred_check_branch
      %19 = sbr.rel (0) target = $region5
    $region4: #{tpu_custom_call.1} parent=1 // pred_region
      _
    $region5: #{tpu_custom_call.1} parent=1 // pred_fallthru
      _
    // Predicated region
    $region6: #{tpu_custom_call.1} parent=1 // pred_check
      _
    $region7: #{tpu_custom_call.1} parent=1 // pred_check_branch
      %21 = sbr.rel (0) target = $region9
    $region8: #{tpu_custom_call.1} parent=1 // pred_region
      _
    $region9: #{tpu_custom_call.1} parent=1 // pred_fallthru
      _
    // Predicated region
    $region10: #{tpu_custom_call.1} parent=1 // pred_check
      _
    $region11: #{tpu_custom_call.1} parent=1 // pred_check_branch
      %23 = sbr.rel (0) target = $region13
    $region12: #{tpu_custom_call.1} parent=1 // pred_region
      _
    $region13: #{tpu_custom_call.1} parent=1 // pred_fallthru
      _
    // Predicated region
    $region14: #{tpu_custom_call.1} parent=1 // pred_check
      _
    $region15: #{tpu_custom_call.1} parent=1 // pred_check_branch
      %25 = sbr.rel (0) target = $region17
    $region16: #{tpu_custom_call.1} parent=1 // pred_region
      %s27 = ssub.s32 6144, 6144
      %28 = vsyncadd [#allocation3], %s27
      %s29 = sshll.u32 [#allocation2], 4
      %s30 = int_to_ptr.vmem [resolvable:$true] %s29
      %35 = dma.hbm_to_vmem [thread:$0]  %s3, 6144, %s30, [#allocation3], 256, 256, 16
    $region17: #{tpu_custom_call.1} parent=1 // pred_fallthru
      _
    // Predicated region
    $region18: #{tpu_custom_call.1} parent=1 // pred_check
      _
    $region19: #{tpu_custom_call.1} parent=1 // pred_check_branch
      %37 = sbr.rel (0) target = $region21
    $region20: #{tpu_custom_call.1} parent=1 // pred_region
      _
    $region21: #{tpu_custom_call.1} parent=1 // pred_fallthru
      _
    // Predicated region
    $region22: #{tpu_custom_call.1} parent=1 // pred_check
      _
    $region23: #{tpu_custom_call.1} parent=1 // pred_check_branch
      %39 = sbr.rel (0) target = $region25
    $region24: #{tpu_custom_call.1} parent=1 // pred_region
      _
    $region25: #{tpu_custom_call.1} parent=1 // pred_fallthru
      _
    // Predicated region
    $region26: #{tpu_custom_call.1} parent=1 // pred_check
      _
    $region27: #{tpu_custom_call.1} parent=1 // pred_check_branch
      %41 = sbr.rel (0) target = $region29
    $region28: #{tpu_custom_call.1} parent=1 // pred_region
      _
    $region29: #{tpu_custom_call.1} parent=1 // pred_fallthru
      _
    // Predicated region
    $region30: #{tpu_custom_call.1} parent=1 // pred_check
      _
    $region31: #{tpu_custom_call.1} parent=1 // pred_check_branch
      %43 = sbr.rel (0) target = $region33
    $region32: #{tpu_custom_call.1} parent=1 // pred_region
      _
    $region33: #{tpu_custom_call.1} parent=1 // pred_fallthru
      _
    // Predicated region
    $region34: #{tpu_custom_call.1} parent=1 // pred_check
      _
    $region35: #{tpu_custom_call.1} parent=1 // pred_check_branch
      %45 = sbr.rel (0) target = $region37
    $region36: #{tpu_custom_call.1} parent=1 // pred_region
      _
    $region37: #{tpu_custom_call.1} parent=1 // pred_fallthru
      _
    // Predicated region
    $region38: #{tpu_custom_call.1} parent=1 // pred_check
      _
    $region39: #{tpu_custom_call.1} parent=1 // pred_check_branch
      %47 = sbr.rel (0) target = $region41
    $region40: #{tpu_custom_call.1} parent=1 // pred_region
      _
    $region41: #{tpu_custom_call.1} parent=1 // pred_fallthru
      _
    // Predicated region
    $region42: #{tpu_custom_call.1} parent=1 // pred_check
      _
    $region43: #{tpu_custom_call.1} parent=1 // pred_check_branch
      %49 = sbr.rel (0) target = $region45
    $region44: #{tpu_custom_call.1} parent=1 // pred_region
      _
    $region45: #{tpu_custom_call.1} parent=1 // pred_fallthru
      _
    // Predicated region
    $region46: #{tpu_custom_call.1} parent=1 // pred_check
      _
    $region47: #{tpu_custom_call.1} parent=1 // pred_check_branch
      %51 = sbr.rel (0) target = $region49
    $region48: #{tpu_custom_call.1} parent=1 // pred_region
      %52 = dma.done [#allocation3], 6144
    $region49: #{tpu_custom_call.1} parent=1 // pred_fallthru
      _
    %v53 = vld [vmem:[%s0] sm:$0xff]
    %v54 = vld [vmem:[%s1] sm:$0xff]
    %v55 = vld [vmem:[%s1 + $0x8] sm:$0xff]
    %v56 = vld [vmem:[%s1 + $0x10] sm:$0xff]
    %v57 = vld [vmem:[%s1 + $0x18] sm:$0xff]
    %v58 = vld [vmem:[%s2] sm:$0x3]
    %v60 = vlaneseq
    %v61 = vshrl.u32 %v60, 7
    %v62 = vsub.s32 0, %v61
    %v63 = vrot.slane %v58, %v62
    %v64 = vlaneseq
    %v65 = vshrl.u32 %v64, 7
    %v66 = vsub.s32 1, %v65
    %v67 = vrot.slane %v58, %v66
    %vm70 = vcmask 130048
    %v72 = vsel %vm70, %v53, 0
    %74 = vmatprep.subr.mxu0 %v55
    %75 = vmatpush1.msra.mxu0 %v54
    %76 = vmatprep.subr.mxu0 %v57
    %77 = vmatpush1.msra.mxu0 %v56
    %78 = vmatprep.subr.mxu0 0.0
    %79 = vmatpush1.msra.mxu0 0.0
    %80 = vmatprep.subr.mxu0 0.0
    %81 = vmatpush1.msra.mxu0 0.0
    %82 = vmatprep.subr.mxu0 0.0
    %83 = vmatpush1.msra.mxu0 0.0
    %84 = vmatprep.subr.mxu0 0.0
    %85 = vmatpush1.msra.mxu0 0.0
    %86 = vmatprep.subr.mxu0 0.0
    %87 = vmatpush1.msra.mxu0 0.0
    %88 = vmatprep.subr.mxu0 0.0
    %89 = vmatpush1.msra.mxu0 0.0
    %90 = vmatprep.subr.mxu0 0.0
    %91 = vmatpush1.msra.mxu0 0.0
    %92 = vmatprep.subr.mxu0 0.0
    %93 = vmatpush1.msra.mxu0 0.0
    %94 = vmatprep.subr.mxu0 0.0
    %95 = vmatpush1.msra.mxu0 0.0
    %96 = vmatprep.subr.mxu0 0.0
    %97 = vmatpush1.msra.mxu0 0.0
    %98 = vmatprep.subr.mxu0 0.0
    %99 = vmatpush1.msra.mxu0 0.0
    %100 = vmatprep.subr.mxu0 0.0
    %101 = vmatpush1.msra.mxu0 0.0
    %102 = vmatprep.subr.mxu0 0.0
    %103 = vmatpush1.msra.mxu0 0.0
    %104 = vmatprep.subr.mxu0 0.0
    %105 = vmatpush1.msra.mxu0 0.0
    %106 = vmatprep.subr.mxu0 0.0
    %107 = vmatpush1.msra.mxu0 0.0
    %108 = vmatprep.subr.mxu0 0.0
    %109 = vmatpush1.msra.mxu0 0.0
    %110 = vmatprep.subr.mxu0 0.0
    %111 = vmatpush1.msra.mxu0 0.0
    %112 = vmatprep.subr.mxu0 0.0
    %113 = vmatpush1.msra.mxu0 0.0
    %114 = vmatprep.subr.mxu0 0.0
    %115 = vmatpush1.msra.mxu0 0.0
    %116 = vmatprep.subr.mxu0 0.0
    %117 = vmatpush1.msra.mxu0 0.0
    %118 = vmatprep.subr.mxu0 0.0
    %119 = vmatpush1.msra.mxu0 0.0
    %120 = vmatprep.subr.mxu0 0.0
    %121 = vmatpush1.msra.mxu0 0.0
    %122 = vmatprep.subr.mxu0 0.0
    %123 = vmatpush1.msra.mxu0 0.0
    %124 = vmatprep.subr.mxu0 0.0
    %125 = vmatpush1.msra.mxu0 0.0
    %126 = vmatprep.subr.mxu0 0.0
    %127 = vmatpush1.msra.mxu0 0.0
    %128 = vmatprep.subr.mxu0 0.0
    %129 = vmatpush1.msra.mxu0 0.0
    %130 = vmatprep.subr.mxu0 0.0
    %131 = vmatpush1.msra.mxu0 0.0
    %132 = vmatprep.subr.mxu0 0.0
    %133 = vmatpush1.msra.mxu0 0.0
    %134 = vmatprep.subr.mxu0 0.0
    %135 = vmatpush1.msra.mxu0 0.0
    %136 = vmatprep.subr.mxu0 0.0
    %137 = vmatpush1.msra.mxu0 0.0
    %138 = vmatprep.mubr.f32.mxu0 0.0
    %139 = vmatmul.mubr.f32.gmra.mrb[0].mxu0 %v72
    %v140 = vpop.f32.mrb[0].mxu0
    %v141 = vadd.f32 %v63, %v140
    %v142 = vpop.f32.mrb[0].mxu0
    %v143 = vadd.f32 %v67, %v142
    %144 = vdwg.mxu0
    %v145 = vmul.f32 %v141, 0.5
    %v146 = vtanh.pop %v145
    %v147 = vmul.f32 %v146, 0.5
    %v148 = vadd.f32 %v147, 0.5
    %v149 = vtanh.pop %v141
    %v150 = vmul.f32 %v143, 0.5
    %v151 = vtanh.pop %v150
    %v152 = vmul.f32 %v151, 0.5
    %v153 = vadd.f32 %v152, 0.5
    %155 = vrot.lane.b32.xlu0 %v149, 64
    %v156 = vpop.permute.xlu0 %155
    %v158 = vmul.f32 %v148, %v156
    %v159 = vtanh.pop %v158
    %v160 = vmul.f32 %v153, %v159
    %v161 = vld [vmem:[#allocation2] sm:$0xff]
    %v162 = vld [vmem:[#allocation2 + $0x8] sm:$0xff]
    %v163 = vld [vmem:[#allocation2 + $0x10] sm:$0xff]
    %v164 = vld [vmem:[#allocation2 + $0x18] sm:$0xff]
    %v165 = vld [vmem:[#allocation2 + $0x20] sm:$0xff]
    %v166 = vld [vmem:[#allocation2 + $0x28] sm:$0xff]
    %v167 = vld [vmem:[#allocation2 + $0x30] sm:$0xff]
    %v168 = vld [vmem:[#allocation2 + $0x38] sm:$0xff]
    %v169 = vld [vmem:[#allocation2 + $0x40] sm:$0xff]
    %v170 = vld [vmem:[#allocation2 + $0x48] sm:$0xff]
    %v171 = vld [vmem:[#allocation2 + $0x50] sm:$0xff]
    %v172 = vld [vmem:[#allocation2 + $0x58] sm:$0xff]
    %v173 = vld [vmem:[#allocation2 + $0x60] sm:$0xff]
    %v174 = vld [vmem:[#allocation2 + $0x68] sm:$0xff]
    %v175 = vld [vmem:[#allocation2 + $0x70] sm:$0xff]
    %v176 = vld [vmem:[#allocation2 + $0x78] sm:$0xff]
    %v177 = vld [vmem:[%s4] sm:$0x3]
    %v179 = vlaneseq
    %v180 = vshrl.u32 %v179, 7
    %v181 = vsub.s32 0, %v180
    %v182 = vrot.slane %v177, %v181
    %v183 = vlaneseq
    %v184 = vshrl.u32 %v183, 7
    %v185 = vsub.s32 1, %v184
    %v186 = vrot.slane %v177, %v185
    %vm189 = vcmask 523264
    %v191 = vsel %vm189, %v160, 0
    %193 = vmatprep.subr.mxu0 %v162
    %194 = vmatpush1.msra.mxu0 %v161
    %195 = vmatprep.subr.mxu0 %v164
    %196 = vmatpush1.msra.mxu0 %v163
    %197 = vmatprep.subr.mxu0 %v166
    %198 = vmatpush1.msra.mxu0 %v165
    %199 = vmatprep.subr.mxu0 %v168
    %200 = vmatpush1.msra.mxu0 %v167
    %201 = vmatprep.subr.mxu0 %v170
    %202 = vmatpush1.msra.mxu0 %v169
    %203 = vmatprep.subr.mxu0 %v172
    %204 = vmatpush1.msra.mxu0 %v171
    %205 = vmatprep.subr.mxu0 %v174
    %206 = vmatpush1.msra.mxu0 %v173
    %207 = vmatprep.subr.mxu0 %v176
    %208 = vmatpush1.msra.mxu0 %v175
    %209 = vmatprep.subr.mxu0 0.0
    %210 = vmatpush1.msra.mxu0 0.0
    %211 = vmatprep.subr.mxu0 0.0
    %212 = vmatpush1.msra.mxu0 0.0
    %213 = vmatprep.subr.mxu0 0.0
    %214 = vmatpush1.msra.mxu0 0.0
    %215 = vmatprep.subr.mxu0 0.0
    %216 = vmatpush1.msra.mxu0 0.0
    %217 = vmatprep.subr.mxu0 0.0
    %218 = vmatpush1.msra.mxu0 0.0
    %219 = vmatprep.subr.mxu0 0.0
    %220 = vmatpush1.msra.mxu0 0.0
    %221 = vmatprep.subr.mxu0 0.0
    %222 = vmatpush1.msra.mxu0 0.0
    %223 = vmatprep.subr.mxu0 0.0
    %224 = vmatpush1.msra.mxu0 0.0
    %225 = vmatprep.subr.mxu0 0.0
    %226 = vmatpush1.msra.mxu0 0.0
    %227 = vmatprep.subr.mxu0 0.0
    %228 = vmatpush1.msra.mxu0 0.0
    %229 = vmatprep.subr.mxu0 0.0
    %230 = vmatpush1.msra.mxu0 0.0
    %231 = vmatprep.subr.mxu0 0.0
    %232 = vmatpush1.msra.mxu0 0.0
    %233 = vmatprep.subr.mxu0 0.0
    %234 = vmatpush1.msra.mxu0 0.0
    %235 = vmatprep.subr.mxu0 0.0
    %236 = vmatpush1.msra.mxu0 0.0
    %237 = vmatprep.subr.mxu0 0.0
    %238 = vmatpush1.msra.mxu0 0.0
    %239 = vmatprep.subr.mxu0 0.0
    %240 = vmatpush1.msra.mxu0 0.0
    %241 = vmatprep.subr.mxu0 0.0
    %242 = vmatpush1.msra.mxu0 0.0
    %243 = vmatprep.subr.mxu0 0.0
    %244 = vmatpush1.msra.mxu0 0.0
    %245 = vmatprep.subr.mxu0 0.0
    %246 = vmatpush1.msra.mxu0 0.0
    %247 = vmatprep.subr.mxu0 0.0
    %248 = vmatpush1.msra.mxu0 0.0
    %249 = vmatprep.subr.mxu0 0.0
    %250 = vmatpush1.msra.mxu0 0.0
    %251 = vmatprep.subr.mxu0 0.0
    %252 = vmatpush1.msra.mxu0 0.0
    %253 = vmatprep.subr.mxu0 0.0
    %254 = vmatpush1.msra.mxu0 0.0
    %255 = vmatprep.subr.mxu0 0.0
    %256 = vmatpush1.msra.mxu0 0.0
    %257 = vmatprep.mubr.f32.mxu0 0.0
    %258 = vmatmul.mubr.f32.gmra.mrb[0].mxu0 %v191
    %v259 = vpop.f32.mrb[0].mxu0
    %v260 = vadd.f32 %v182, %v259
    %v261 = vpop.f32.mrb[0].mxu0
    %v262 = vadd.f32 %v186, %v261
    %263 = vdwg.mxu0
    %v264 = vmul.f32 %v260, 0.5
    %v265 = vtanh.pop %v264
    %v266 = vmul.f32 %v265, 0.5
    %v267 = vadd.f32 %v266, 0.5
    %v268 = vtanh.pop %v260
    %v269 = vmul.f32 %v262, 0.5
    %v270 = vtanh.pop %v269
    %v271 = vmul.f32 %v270, 0.5
    %v272 = vadd.f32 %v271, 0.5
    %274 = vrot.lane.b32.xlu0 %v268, 64
    %v275 = vpop.permute.xlu0 %274
    %v277 = vmul.f32 %v267, %v275
    %v278 = vtanh.pop %v277
    %v279 = vmul.f32 %v272, %v278
    %s280 = scalar_lea.vmem [#allocation2], 128
    %v281 = vld [vmem:[%s280] sm:$0xff]
    %v282 = vld [vmem:[%s280 + $0x8] sm:$0xff]
    %v283 = vld [vmem:[%s280 + $0x10] sm:$0xff]
    %v284 = vld [vmem:[%s280 + $0x18] sm:$0xff]
    %v285 = vld [vmem:[%s280 + $0x20] sm:$0xff]
    %v286 = vld [vmem:[%s280 + $0x28] sm:$0xff]
    %v287 = vld [vmem:[%s280 + $0x30] sm:$0xff]
    %v288 = vld [vmem:[%s280 + $0x38] sm:$0xff]
    %v289 = vld [vmem:[%s280 + $0x40] sm:$0xff]
    %v290 = vld [vmem:[%s280 + $0x48] sm:$0xff]
    %v291 = vld [vmem:[%s280 + $0x50] sm:$0xff]
    %v292 = vld [vmem:[%s280 + $0x58] sm:$0xff]
    %v293 = vld [vmem:[%s280 + $0x60] sm:$0xff]
    %v294 = vld [vmem:[%s280 + $0x68] sm:$0xff]
    %v295 = vld [vmem:[%s280 + $0x70] sm:$0xff]
    %v296 = vld [vmem:[%s280 + $0x78] sm:$0xff]
    %s297 = scalar_lea.vmem %s4, 2
    %v298 = vld [vmem:[%s297] sm:$0x3]
    %v300 = vlaneseq
    %v301 = vshrl.u32 %v300, 7
    %v302 = vsub.s32 0, %v301
    %v303 = vrot.slane %v298, %v302
    %v304 = vlaneseq
    %v305 = vshrl.u32 %v304, 7
    %v306 = vsub.s32 1, %v305
    %v307 = vrot.slane %v298, %v306
    %v311 = vsel %vm189, %v279, 0
    %313 = vmatprep.subr.mxu0 %v282
    %314 = vmatpush1.msra.mxu0 %v281
    %315 = vmatprep.subr.mxu0 %v284
    %316 = vmatpush1.msra.mxu0 %v283
    %317 = vmatprep.subr.mxu0 %v286
    %318 = vmatpush1.msra.mxu0 %v285
    %319 = vmatprep.subr.mxu0 %v288
    %320 = vmatpush1.msra.mxu0 %v287
    %321 = vmatprep.subr.mxu0 %v290
    %322 = vmatpush1.msra.mxu0 %v289
    %323 = vmatprep.subr.mxu0 %v292
    %324 = vmatpush1.msra.mxu0 %v291
    %325 = vmatprep.subr.mxu0 %v294
    %326 = vmatpush1.msra.mxu0 %v293
    %327 = vmatprep.subr.mxu0 %v296
    %328 = vmatpush1.msra.mxu0 %v295
    %329 = vmatprep.subr.mxu0 0.0
    %330 = vmatpush1.msra.mxu0 0.0
    %331 = vmatprep.subr.mxu0 0.0
    %332 = vmatpush1.msra.mxu0 0.0
    %333 = vmatprep.subr.mxu0 0.0
    %334 = vmatpush1.msra.mxu0 0.0
    %335 = vmatprep.subr.mxu0 0.0
    %336 = vmatpush1.msra.mxu0 0.0
    %337 = vmatprep.subr.mxu0 0.0
    %338 = vmatpush1.msra.mxu0 0.0
    %339 = vmatprep.subr.mxu0 0.0
    %340 = vmatpush1.msra.mxu0 0.0
    %341 = vmatprep.subr.mxu0 0.0
    %342 = vmatpush1.msra.mxu0 0.0
    %343 = vmatprep.subr.mxu0 0.0
    %344 = vmatpush1.msra.mxu0 0.0
    %345 = vmatprep.subr.mxu0 0.0
    %346 = vmatpush1.msra.mxu0 0.0
    %347 = vmatprep.subr.mxu0 0.0
    %348 = vmatpush1.msra.mxu0 0.0
    %349 = vmatprep.subr.mxu0 0.0
    %350 = vmatpush1.msra.mxu0 0.0
    %351 = vmatprep.subr.mxu0 0.0
    %352 = vmatpush1.msra.mxu0 0.0
    %353 = vmatprep.subr.mxu0 0.0
    %354 = vmatpush1.msra.mxu0 0.0
    %355 = vmatprep.subr.mxu0 0.0
    %356 = vmatpush1.msra.mxu0 0.0
    %357 = vmatprep.subr.mxu0 0.0
    %358 = vmatpush1.msra.mxu0 0.0
    %359 = vmatprep.subr.mxu0 0.0
    %360 = vmatpush1.msra.mxu0 0.0
    %361 = vmatprep.subr.mxu0 0.0
    %362 = vmatpush1.msra.mxu0 0.0
    %363 = vmatprep.subr.mxu0 0.0
    %364 = vmatpush1.msra.mxu0 0.0
    %365 = vmatprep.subr.mxu0 0.0
    %366 = vmatpush1.msra.mxu0 0.0
    %367 = vmatprep.subr.mxu0 0.0
    %368 = vmatpush1.msra.mxu0 0.0
    %369 = vmatprep.subr.mxu0 0.0
    %370 = vmatpush1.msra.mxu0 0.0
    %371 = vmatprep.subr.mxu0 0.0
    %372 = vmatpush1.msra.mxu0 0.0
    %373 = vmatprep.subr.mxu0 0.0
    %374 = vmatpush1.msra.mxu0 0.0
    %375 = vmatprep.subr.mxu0 0.0
    %376 = vmatpush1.msra.mxu0 0.0
    %377 = vmatprep.mubr.f32.mxu0 0.0
    %378 = vmatmul.mubr.f32.gmra.mrb[0].mxu0 %v311
    %v379 = vpop.f32.mrb[0].mxu0
    %v380 = vadd.f32 %v303, %v379
    %v381 = vpop.f32.mrb[0].mxu0
    %v382 = vadd.f32 %v307, %v381
    %383 = vdwg.mxu0
    %v384 = vmul.f32 %v380, 0.5
    %v385 = vtanh.pop %v384
    %v386 = vmul.f32 %v385, 0.5
    %v387 = vadd.f32 %v386, 0.5
    %v388 = vtanh.pop %v380
    %v389 = vmul.f32 %v382, 0.5
    %v390 = vtanh.pop %v389
    %v391 = vmul.f32 %v390, 0.5
    %v392 = vadd.f32 %v391, 0.5
    %394 = vrot.lane.b32.xlu0 %v388, 64
    %v395 = vpop.permute.xlu0 %394
    %v397 = vmul.f32 %v387, %v395
    %v398 = vtanh.pop %v397
    %v399 = vmul.f32 %v392, %v398
    %s400 = scalar_lea.vmem [#allocation2], 256
    %v401 = vld [vmem:[%s400] sm:$0xff]
    %v402 = vld [vmem:[%s400 + $0x8] sm:$0xff]
    %v403 = vld [vmem:[%s400 + $0x10] sm:$0xff]
    %v404 = vld [vmem:[%s400 + $0x18] sm:$0xff]
    %v405 = vld [vmem:[%s400 + $0x20] sm:$0xff]
    %v406 = vld [vmem:[%s400 + $0x28] sm:$0xff]
    %v407 = vld [vmem:[%s400 + $0x30] sm:$0xff]
    %v408 = vld [vmem:[%s400 + $0x38] sm:$0xff]
    %v409 = vld [vmem:[%s400 + $0x40] sm:$0xff]
    %v410 = vld [vmem:[%s400 + $0x48] sm:$0xff]
    %v411 = vld [vmem:[%s400 + $0x50] sm:$0xff]
    %v412 = vld [vmem:[%s400 + $0x58] sm:$0xff]
    %v413 = vld [vmem:[%s400 + $0x60] sm:$0xff]
    %v414 = vld [vmem:[%s400 + $0x68] sm:$0xff]
    %v415 = vld [vmem:[%s400 + $0x70] sm:$0xff]
    %v416 = vld [vmem:[%s400 + $0x78] sm:$0xff]
    %s417 = scalar_lea.vmem %s4, 4
    %v418 = vld [vmem:[%s417] sm:$0x3]
    %v420 = vlaneseq
    %v421 = vshrl.u32 %v420, 7
    %v422 = vsub.s32 0, %v421
    %v423 = vrot.slane %v418, %v422
    %v424 = vlaneseq
    %v425 = vshrl.u32 %v424, 7
    %v426 = vsub.s32 1, %v425
    %v427 = vrot.slane %v418, %v426
    %v431 = vsel %vm189, %v399, 0
    %433 = vmatprep.subr.mxu0 %v402
    %434 = vmatpush1.msra.mxu0 %v401
    %435 = vmatprep.subr.mxu0 %v404
    %436 = vmatpush1.msra.mxu0 %v403
    %437 = vmatprep.subr.mxu0 %v406
    %438 = vmatpush1.msra.mxu0 %v405
    %439 = vmatprep.subr.mxu0 %v408
    %440 = vmatpush1.msra.mxu0 %v407
    %441 = vmatprep.subr.mxu0 %v410
    %442 = vmatpush1.msra.mxu0 %v409
    %443 = vmatprep.subr.mxu0 %v412
    %444 = vmatpush1.msra.mxu0 %v411
    %445 = vmatprep.subr.mxu0 %v414
    %446 = vmatpush1.msra.mxu0 %v413
    %447 = vmatprep.subr.mxu0 %v416
    %448 = vmatpush1.msra.mxu0 %v415
    %449 = vmatprep.subr.mxu0 0.0
    %450 = vmatpush1.msra.mxu0 0.0
    %451 = vmatprep.subr.mxu0 0.0
    %452 = vmatpush1.msra.mxu0 0.0
    %453 = vmatprep.subr.mxu0 0.0
    %454 = vmatpush1.msra.mxu0 0.0
    %455 = vmatprep.subr.mxu0 0.0
    %456 = vmatpush1.msra.mxu0 0.0
    %457 = vmatprep.subr.mxu0 0.0
    %458 = vmatpush1.msra.mxu0 0.0
    %459 = vmatprep.subr.mxu0 0.0
    %460 = vmatpush1.msra.mxu0 0.0
    %461 = vmatprep.subr.mxu0 0.0
    %462 = vmatpush1.msra.mxu0 0.0
    %463 = vmatprep.subr.mxu0 0.0
    %464 = vmatpush1.msra.mxu0 0.0
    %465 = vmatprep.subr.mxu0 0.0
    %466 = vmatpush1.msra.mxu0 0.0
    %467 = vmatprep.subr.mxu0 0.0
    %468 = vmatpush1.msra.mxu0 0.0
    %469 = vmatprep.subr.mxu0 0.0
    %470 = vmatpush1.msra.mxu0 0.0
    %471 = vmatprep.subr.mxu0 0.0
    %472 = vmatpush1.msra.mxu0 0.0
    %473 = vmatprep.subr.mxu0 0.0
    %474 = vmatpush1.msra.mxu0 0.0
    %475 = vmatprep.subr.mxu0 0.0
    %476 = vmatpush1.msra.mxu0 0.0
    %477 = vmatprep.subr.mxu0 0.0
    %478 = vmatpush1.msra.mxu0 0.0
    %479 = vmatprep.subr.mxu0 0.0
    %480 = vmatpush1.msra.mxu0 0.0
    %481 = vmatprep.subr.mxu0 0.0
    %482 = vmatpush1.msra.mxu0 0.0
    %483 = vmatprep.subr.mxu0 0.0
    %484 = vmatpush1.msra.mxu0 0.0
    %485 = vmatprep.subr.mxu0 0.0
    %486 = vmatpush1.msra.mxu0 0.0
    %487 = vmatprep.subr.mxu0 0.0
    %488 = vmatpush1.msra.mxu0 0.0
    %489 = vmatprep.subr.mxu0 0.0
    %490 = vmatpush1.msra.mxu0 0.0
    %491 = vmatprep.subr.mxu0 0.0
    %492 = vmatpush1.msra.mxu0 0.0
    %493 = vmatprep.subr.mxu0 0.0
    %494 = vmatpush1.msra.mxu0 0.0
    %495 = vmatprep.subr.mxu0 0.0
    %496 = vmatpush1.msra.mxu0 0.0
    %497 = vmatprep.mubr.f32.mxu0 0.0
    %498 = vmatmul.mubr.f32.gmra.mrb[0].mxu0 %v431
    %v499 = vpop.f32.mrb[0].mxu0
    %v500 = vadd.f32 %v423, %v499
    %v501 = vpop.f32.mrb[0].mxu0
    %v502 = vadd.f32 %v427, %v501
    %503 = vdwg.mxu0
    %v504 = vmul.f32 %v500, 0.5
    %v505 = vtanh.pop %v504
    %v506 = vmul.f32 %v505, 0.5
    %v507 = vadd.f32 %v506, 0.5
    %v508 = vtanh.pop %v500
    %v509 = vmul.f32 %v502, 0.5
    %v510 = vtanh.pop %v509
    %v511 = vmul.f32 %v510, 0.5
    %v512 = vadd.f32 %v511, 0.5
    %514 = vrot.lane.b32.xlu0 %v508, 64
    %v515 = vpop.permute.xlu0 %514
    %v517 = vmul.f32 %v507, %v515
    %v518 = vtanh.pop %v517
    %v519 = vmul.f32 %v512, %v518
    %v520 = vld [vmem:[%s5] sm:$0x1]
    %v522 = vlaneseq
    %v523 = vshrl.u32 %v522, 7
    %v524 = vsub.s32 0, %v523
    %v525 = vrot.slane %v520, %v524
    %v527 = vmul.f32 %v519, %v525
    %v528 = vld [vmem:[%s6] sm:$0x1]
    %v530 = vlaneseq
    %v531 = vshrl.u32 %v530, 7
    %v532 = vsub.s32 0, %v531
    %v533 = vrot.slane %v528, %v532
    %v535 = vadd.f32 %v527, %v533
    %v536 = vld [vmem:[%s7] sm:$0xff]
    %v537 = vld [vmem:[%s7 + $0x8] sm:$0xff]
    %v538 = vld [vmem:[%s7 + $0x10] sm:$0xff]
    %v539 = vld [vmem:[%s7 + $0x18] sm:$0xff]
    %v540 = vld [vmem:[%s7 + $0x20] sm:$0xff]
    %v541 = vld [vmem:[%s7 + $0x28] sm:$0xff]
    %v542 = vld [vmem:[%s7 + $0x30] sm:$0xff]
    %v543 = vld [vmem:[%s7 + $0x38] sm:$0xff]
    %v544 = vld [vmem:[%s8] sm:$0x1]
    %v546 = vlaneseq
    %v547 = vshrl.u32 %v546, 7
    %v548 = vsub.s32 0, %v547
    %v549 = vrot.slane %v544, %v548
    %v552 = vsel %vm189, %v535, 0
    %554 = vmatprep.subr.mxu0 0.0
    %555 = vmatpush1.msra.mxu0 %v536
    %556 = vmatprep.subr.mxu0 0.0
    %557 = vmatpush1.msra.mxu0 %v537
    %558 = vmatprep.subr.mxu0 0.0
    %559 = vmatpush1.msra.mxu0 %v538
    %560 = vmatprep.subr.mxu0 0.0
    %561 = vmatpush1.msra.mxu0 %v539
    %562 = vmatprep.subr.mxu0 0.0
    %563 = vmatpush1.msra.mxu0 %v540
    %564 = vmatprep.subr.mxu0 0.0
    %565 = vmatpush1.msra.mxu0 %v541
    %566 = vmatprep.subr.mxu0 0.0
    %567 = vmatpush1.msra.mxu0 %v542
    %568 = vmatprep.subr.mxu0 0.0
    %569 = vmatpush1.msra.mxu0 %v543
    %570 = vmatprep.subr.mxu0 0.0
    %571 = vmatpush1.msra.mxu0 0.0
    %572 = vmatprep.subr.mxu0 0.0
    %573 = vmatpush1.msra.mxu0 0.0
    %574 = vmatprep.subr.mxu0 0.0
    %575 = vmatpush1.msra.mxu0 0.0
    %576 = vmatprep.subr.mxu0 0.0
    %577 = vmatpush1.msra.mxu0 0.0
    %578 = vmatprep.subr.mxu0 0.0
    %579 = vmatpush1.msra.mxu0 0.0
    %580 = vmatprep.subr.mxu0 0.0
    %581 = vmatpush1.msra.mxu0 0.0
    %582 = vmatprep.subr.mxu0 0.0
    %583 = vmatpush1.msra.mxu0 0.0
    %584 = vmatprep.subr.mxu0 0.0
    %585 = vmatpush1.msra.mxu0 0.0
    %586 = vmatprep.subr.mxu0 0.0
    %587 = vmatpush1.msra.mxu0 0.0
    %588 = vmatprep.subr.mxu0 0.0
    %589 = vmatpush1.msra.mxu0 0.0
    %590 = vmatprep.subr.mxu0 0.0
    %591 = vmatpush1.msra.mxu0 0.0
    %592 = vmatprep.subr.mxu0 0.0
    %593 = vmatpush1.msra.mxu0 0.0
    %594 = vmatprep.subr.mxu0 0.0
    %595 = vmatpush1.msra.mxu0 0.0
    %596 = vmatprep.subr.mxu0 0.0
    %597 = vmatpush1.msra.mxu0 0.0
    %598 = vmatprep.subr.mxu0 0.0
    %599 = vmatpush1.msra.mxu0 0.0
    %600 = vmatprep.subr.mxu0 0.0
    %601 = vmatpush1.msra.mxu0 0.0
    %602 = vmatprep.subr.mxu0 0.0
    %603 = vmatpush1.msra.mxu0 0.0
    %604 = vmatprep.subr.mxu0 0.0
    %605 = vmatpush1.msra.mxu0 0.0
    %606 = vmatprep.subr.mxu0 0.0
    %607 = vmatpush1.msra.mxu0 0.0
    %608 = vmatprep.subr.mxu0 0.0
    %609 = vmatpush1.msra.mxu0 0.0
    %610 = vmatprep.subr.mxu0 0.0
    %611 = vmatpush1.msra.mxu0 0.0
    %612 = vmatprep.subr.mxu0 0.0
    %613 = vmatpush1.msra.mxu0 0.0
    %614 = vmatprep.subr.mxu0 0.0
    %615 = vmatpush1.msra.mxu0 0.0
    %616 = vmatprep.subr.mxu0 0.0
    %617 = vmatpush1.msra.mxu0 0.0
    %618 = vmatprep.mubr.f32.mxu0 0.0
    %619 = vmatmul.mubr.f32.gmra.mrb[0].mxu0 %v552
    %v620 = vpop.f32.mrb[0].mxu0
    %v621 = vadd.f32 %v549, %v620
    %v622 = vpop.f32.mrb[0].mxu0
    %623 = vdwg.mxu0
    %v624 = vmax.f32 %v621, 0.0
    %v625 = vld [vmem:[%s9] sm:$0xff]
    %v626 = vld [vmem:[%s9 + $0x8] sm:$0xff]
    %v627 = vld [vmem:[%s9 + $0x10] sm:$0xff]
    %v628 = vld [vmem:[%s9 + $0x18] sm:$0xff]
    %v629 = vld [vmem:[%s10] sm:$0x1]
    %v631 = vlaneseq
    %v632 = vshrl.u32 %v631, 7
    %v633 = vsub.s32 0, %v632
    %v634 = vrot.slane %v629, %v633
    %vm636 = vcmask 261120
    %v638 = vsel %vm636, %v624, 0
    %640 = vmatprep.subr.mxu0 0.0
    %641 = vmatpush1.msra.mxu0 %v625
    %642 = vmatprep.subr.mxu0 0.0
    %643 = vmatpush1.msra.mxu0 %v626
    %644 = vmatprep.subr.mxu0 0.0
    %645 = vmatpush1.msra.mxu0 %v627
    %646 = vmatprep.subr.mxu0 0.0
    %647 = vmatpush1.msra.mxu0 %v628
    %648 = vmatprep.subr.mxu0 0.0
    %649 = vmatpush1.msra.mxu0 0.0
    %650 = vmatprep.subr.mxu0 0.0
    %651 = vmatpush1.msra.mxu0 0.0
    %652 = vmatprep.subr.mxu0 0.0
    %653 = vmatpush1.msra.mxu0 0.0
    %654 = vmatprep.subr.mxu0 0.0
    %655 = vmatpush1.msra.mxu0 0.0
    %656 = vmatprep.subr.mxu0 0.0
    %657 = vmatpush1.msra.mxu0 0.0
    %658 = vmatprep.subr.mxu0 0.0
    %659 = vmatpush1.msra.mxu0 0.0
    %660 = vmatprep.subr.mxu0 0.0
    %661 = vmatpush1.msra.mxu0 0.0
    %662 = vmatprep.subr.mxu0 0.0
    %663 = vmatpush1.msra.mxu0 0.0
    %664 = vmatprep.subr.mxu0 0.0
    %665 = vmatpush1.msra.mxu0 0.0
    %666 = vmatprep.subr.mxu0 0.0
    %667 = vmatpush1.msra.mxu0 0.0
    %668 = vmatprep.subr.mxu0 0.0
    %669 = vmatpush1.msra.mxu0 0.0
    %670 = vmatprep.subr.mxu0 0.0
    %671 = vmatpush1.msra.mxu0 0.0
    %672 = vmatprep.subr.mxu0 0.0
    %673 = vmatpush1.msra.mxu0 0.0
    %674 = vmatprep.subr.mxu0 0.0
    %675 = vmatpush1.msra.mxu0 0.0
    %676 = vmatprep.subr.mxu0 0.0
    %677 = vmatpush1.msra.mxu0 0.0
    %678 = vmatprep.subr.mxu0 0.0
    %679 = vmatpush1.msra.mxu0 0.0
    %680 = vmatprep.subr.mxu0 0.0
    %681 = vmatpush1.msra.mxu0 0.0
    %682 = vmatprep.subr.mxu0 0.0
    %683 = vmatpush1.msra.mxu0 0.0
    %684 = vmatprep.subr.mxu0 0.0
    %685 = vmatpush1.msra.mxu0 0.0
    %686 = vmatprep.subr.mxu0 0.0
    %687 = vmatpush1.msra.mxu0 0.0
    %688 = vmatprep.subr.mxu0 0.0
    %689 = vmatpush1.msra.mxu0 0.0
    %690 = vmatprep.subr.mxu0 0.0
    %691 = vmatpush1.msra.mxu0 0.0
    %692 = vmatprep.subr.mxu0 0.0
    %693 = vmatpush1.msra.mxu0 0.0
    %694 = vmatprep.subr.mxu0 0.0
    %695 = vmatpush1.msra.mxu0 0.0
    %696 = vmatprep.subr.mxu0 0.0
    %697 = vmatpush1.msra.mxu0 0.0
    %698 = vmatprep.subr.mxu0 0.0
    %699 = vmatpush1.msra.mxu0 0.0
    %700 = vmatprep.subr.mxu0 0.0
    %701 = vmatpush1.msra.mxu0 0.0
    %702 = vmatprep.subr.mxu0 0.0
    %703 = vmatpush1.msra.mxu0 0.0
    %704 = vmatprep.mubr.f32.mxu0 0.0
    %705 = vmatmul.mubr.f32.gmra.mrb[0].mxu0 %v638
    %v706 = vpop.f32.mrb[0].mxu0
    %v707 = vadd.f32 %v634, %v706
    %v708 = vpop.f32.mrb[0].mxu0
    %709 = vdwg.mxu0
    %710 = vst [vmem:[#allocation5] sm:$0xff] %v707
    // Predicated region
    $region50: #{tpu_custom_call.1} parent=1 // pred_check
      _
    $region51: #{tpu_custom_call.1} parent=1 // pred_check_branch
      %712 = sbr.rel (0) target = $region53
    $region52: #{tpu_custom_call.1} parent=1 // pred_region
      %s714 = ssub.s32 128, 128
      %715 = vsyncadd [#allocation4], %s714
      %s717 = sshll.u32 [#allocation5], 4
      %s718 = int_to_ptr.vmem [resolvable:$true] %s717
      %720 = dma.vmem_to_hbm [thread:$0]  %s718, 128, %s11, [#allocation4]
    $region53: #{tpu_custom_call.1} parent=1 // pred_fallthru
      _
    // Predicated region
    $region54: #{tpu_custom_call.1} parent=1 // pred_check
      _
    $region55: #{tpu_custom_call.1} parent=1 // pred_check_branch
      %722 = sbr.rel (0) target = $region57
    $region56: #{tpu_custom_call.1} parent=1 // pred_region
      %723 = dma.done [#allocation4], 128
    $region57: #{tpu_custom_call.1} parent=1 // pred_fallthru
      _
    %724 = vsyncpa [#allocation3], 1
    %725 = vsyncpa [#allocation4], 1

</llo_original>
